<compile_context>
chip_gen: v5e
topology: v5e:2x2
jax: 0.10.0
libtpu: 0.0.40
codegen_flags: <defaults>
</compile_context>

<pallas_src>
import functools

import jax
import jax.numpy as jnp
from jax.experimental import pallas as pl
from jax.experimental.pallas import tpu as pltpu


# ----------------------------------------------------------------------------
# Tiling helpers (generation-aware).
# ----------------------------------------------------------------------------
def _vmem_budgets():
    """(pass1_tile_budget, pass2_tile_budget, vmem_limit_bytes).

    vmem_capacity_bytes: 128 MiB on v5e/v6e, 64 MiB per TensorCore on v7x.
    We keep ~half as headroom, raise vmem_limit_bytes to that (the scoped
    defaults of 16/32 MiB are far below physical capacity), and split it
    between the passes: pass 1 only double-buffers its input (~2x tile) while
    pass 2 double-buffers input *and* output (~4x tile)."""
    try:
        cap = pltpu.get_tpu_info().vmem_capacity_bytes
    except Exception:  # conservative fallback
        cap = 64 * 1024 * 1024
    usable = min(cap // 2, 64 * 1024 * 1024)
    return usable // 3, usable // 5, usable


def _pick_row_tile(rows, sublane, cap=512):
    """Row (sublane-axis) tile.  Always legal: either the full row extent or a
    multiple of `sublane`; partial tail blocks come from cdiv grids and are
    harmless because every op here is row-independent.  When possible we make
    at least two row blocks so the 'parallel' row axis can feed both v7x
    TensorCores (free on v5e/v6e once hw is budget-limited)."""
    if rows <= sublane:
        return rows
    target = min(cap, pl.cdiv(rows, 2))
    return pl.cdiv(target, sublane) * sublane


def _pick_hw_tile(hw, t_r, itemsize, budget_bytes):
    """Lane-axis tile: the full hw extent when it fits the per-tile budget,
    otherwise the largest multiple of 128 that does (cdiv grid + tail mask in
    the stats pass handle non-divisible hw)."""
    max_lanes = budget_bytes // max(1, t_r * itemsize)
    if max_lanes >= hw:
        return hw
    return max(128, (max_lanes // 128) * 128)


# ----------------------------------------------------------------------------
# Pass 1: per-row (= per (sample, channel)) partial sums and sums of squares.
# ----------------------------------------------------------------------------
def _stats_kernel(x_ref, sum_ref, sumsq_ref, *, hw, t_hw):
    """x_ref: VMEM (T_R, T_HW); sum_ref / sumsq_ref: VMEM (T_R, 1) f32
    accumulators resident across the hw grid axis for a fixed row block."""

    @pl.when(pl.program_id(1) == 0)
    def _():
        sum_ref[...] = jnp.zeros_like(sum_ref)
        sumsq_ref[...] = jnp.zeros_like(sumsq_ref)

    x = x_ref[...].astype(jnp.float32)                        # (T_R, T_HW)
    if hw % t_hw != 0:
        # Static branch: only non-divisible hw pays for the tail mask.
        lane = jax.lax.broadcasted_iota(jnp.int32, x.shape, 1)
        valid = pl.program_id(1) * t_hw + lane < hw
        x = jnp.where(valid, x, 0.0)
    sum_ref[...] += jnp.sum(x, axis=1, keepdims=True)         # (T_R, 1)
    sumsq_ref[...] += jnp.sum(x * x, axis=1, keepdims=True)   # (T_R, 1)


# ----------------------------------------------------------------------------
# Pass 2: normalize with precomputed per-row scale / shift.
# ----------------------------------------------------------------------------
def _norm_kernel(scale_ref, shift_ref, x_ref, o_ref):
    """scale_ref/shift_ref: VMEM (T_R, 1) in the compute dtype (f32, or bf16
    for bf16 inputs -> native bf16 VPU on v6e/v7x); x_ref/o_ref: (T_R, T_HW)."""
    y = x_ref[...] * scale_ref[...] + shift_ref[...]
    o_ref[...] = y.astype(o_ref.dtype)


def domain_specific_batchnorm(x, domain_id, gamma, beta, *, eps=1e-5):
    """Training-mode forward of DomainSpecificBatchNorm (2-D variant).

    x: (N, C, H, W); gamma/beta: (num_classes, C); domain_id: int scalar."""
    N, C, H, W = x.shape
    hw = H * W
    rows = N * C
    count = N * hw
    itemsize = jnp.dtype(x.dtype).itemsize

    # Free contiguous reshape: rows (N*C) on sublanes, H*W on lanes.
    x2 = x.reshape(rows, hw)

    if x.dtype in (jnp.dtype(jnp.float32), jnp.dtype(jnp.bfloat16)):
        compute_dtype = x.dtype
    else:
        compute_dtype = jnp.float32

    sublane = max(8, 32 // itemsize)
    budget1, budget2, vmem_limit = _vmem_budgets()
    t_r = _pick_row_tile(rows, sublane)
    t_hw1 = _pick_hw_tile(hw, t_r, itemsize, budget1)
    t_hw2 = _pick_hw_tile(hw, t_r, itemsize, budget2)
    n_r = pl.cdiv(rows, t_r)
    n_hw1 = pl.cdiv(hw, t_hw1)
    n_hw2 = pl.cdiv(hw, t_hw2)

    # -------------------- pass 1: streaming statistics ----------------------
    sums, sqs = pl.pallas_call(
        functools.partial(_stats_kernel, hw=hw, t_hw=t_hw1),
        out_shape=(
            jax.ShapeDtypeStruct((rows, 1), jnp.float32),
            jax.ShapeDtypeStruct((rows, 1), jnp.float32),
        ),
        grid=(n_r, n_hw1),
        in_specs=[pl.BlockSpec((t_r, t_hw1), lambda r, h: (r, h))],
        out_specs=(
            pl.BlockSpec((t_r, 1), lambda r, h: (r, 0)),
            pl.BlockSpec((t_r, 1), lambda r, h: (r, 0)),
        ),
        compiler_params=pltpu.CompilerParams(
            dimension_semantics=("parallel", "arbitrary"),
            vmem_limit_bytes=vmem_limit),
        cost_estimate=pl.CostEstimate(
            flops=3 * x.size,
            transcendentals=0,
            bytes_accessed=x.size * itemsize + 2 * rows * 4),
    )(x2)

    # ---- tiny O(C) glue: batch stats, domain-row select, scale/shift fuse ---
    # (Could be folded into pass 2 under pl.when for latency-critical tiny
    #  feature maps; for streaming-bound shapes it is negligible.)
    sum_c = jnp.sum(sums.reshape(N, C), axis=0)              # (C,)
    sq_c = jnp.sum(sqs.reshape(N, C), axis=0)                # (C,)
    mean = sum_c / count
    var = sq_c / count - mean * mean                         # biased variance
    var = jnp.maximum(var, 0.0)                              # guard cancellation
    inv_std = jax.lax.rsqrt(var + eps)
    g = jnp.take(gamma.astype(jnp.float32), domain_id, axis=0)   # (C,)
    b = jnp.take(beta.astype(jnp.float32), domain_id, axis=0)    # (C,)
    scale = g * inv_std                                       # (C,)
    shift = b - mean * scale                                  # (C,)
    # Per-row (N*C, 1) copies -- O(N*C) only, row order matches x.reshape.
    scale_r = jnp.tile(scale, N).reshape(rows, 1).astype(compute_dtype)
    shift_r = jnp.tile(shift, N).reshape(rows, 1).astype(compute_dtype)

    # -------------------- pass 2: normalize (fully parallel) ----------------
    out2 = pl.pallas_call(
        _norm_kernel,
        out_shape=jax.ShapeDtypeStruct((rows, hw), x.dtype),
        grid=(n_r, n_hw2),
        in_specs=[
            pl.BlockSpec((t_r, 1), lambda r, h: (r, 0)),
            pl.BlockSpec((t_r, 1), lambda r, h: (r, 0)),
            pl.BlockSpec((t_r, t_hw2), lambda r, h: (r, h)),
        ],
        out_specs=pl.BlockSpec((t_r, t_hw2), lambda r, h: (r, h)),
        compiler_params=pltpu.CompilerParams(
            dimension_semantics=("parallel", "parallel"),
            vmem_limit_bytes=vmem_limit),
        cost_estimate=pl.CostEstimate(
            flops=2 * x.size,
            transcendentals=0,
            bytes_accessed=2 * x.size * itemsize + 2 * rows * 4),
    )(scale_r, shift_r, x2)

    return out2.reshape(N, C, H, W)


if __name__ == "__main__":
    key = jax.random.PRNGKey(0)
    k_x, k_g, k_b = jax.random.split(key, 3)

    # Small shapes consistent with the module's 4-D (NCHW) input path.
    N, C, H, W = 2, 4, 16, 16
    num_classes = 2
    eps = 1e-5

    x = jax.random.normal(k_x, (N, C, H, W), dtype=jnp.float32)
    # PyTorch default init is gamma=1, beta=0; perturb deterministically so the
    # domain selection is actually exercised/visible.
    gamma = 1.0 + 0.1 * jax.random.normal(k_g, (num_classes, C), dtype=jnp.float32)
    beta = 0.1 * jax.random.normal(k_b, (num_classes, C), dtype=jnp.float32)

    domain_id = 1
    out = domain_specific_batchnorm(x, domain_id, gamma, beta, eps=eps)
    out = jax.block_until_ready(out)

    # Pure-JAX reference (BatchNorm2d training-mode forward).
    mean = x.mean(axis=(0, 2, 3), keepdims=True)
    var = ((x - mean) ** 2).mean(axis=(0, 2, 3), keepdims=True)
    ref = (x - mean) / jnp.sqrt(var + eps)
    ref = ref * gamma[domain_id].reshape(1, C, 1, 1) + beta[domain_id].reshape(1, C, 1, 1)

    assert out.shape == x.shape and out.dtype == x.dtype
    assert jnp.allclose(out, ref, atol=1e-4, rtol=1e-4), "mismatch vs reference"

    print("KERNEL_OK")
</pallas_src>

<mosaic_0001>
module attributes {stable_mosaic.version = 11 : i64} {
  func.func @_stats_kernel(%arg0: i32, %arg1: i32, %arg2: memref<8x256xf32, #tpu.memory_space<vmem>>, %arg3: memref<8x1xf32, #tpu.memory_space<vmem>>, %arg4: memref<8x1xf32, #tpu.memory_space<vmem>>) attributes {dimension_semantics = [#tpu.dimension_semantics<parallel>, #tpu.dimension_semantics<arbitrary>], iteration_bounds = array<i64: 1, 1>, scalar_prefetch = 0 : i64, scratch_operands = 0 : i64, tpu.core_type = #tpu.core_type<tc>, window_params = [{transform_indices = @transform_0, window_bounds = array<i64: 8, 256>}, {transform_indices = @transform_1, window_bounds = array<i64: 8, 1>}, {transform_indices = @transform_2, window_bounds = array<i64: 8, 1>}]} {
    %c0_i32 = arith.constant 0 : i32
    %0 = arith.cmpi eq, %arg1, %c0_i32 : i32
    %1 = arith.extui %0 : i1 to i32
    %c0_i32_0 = arith.constant 0 : i32
    %2 = arith.cmpi ne, %1, %c0_i32_0 : i32
    scf.if %2 {
      %cst_11 = arith.constant 0.000000e+00 : f32
      %15 = vector.broadcast %cst_11 : f32 to vector<8x1xf32>
      %c0_12 = arith.constant 0 : index
      %c0_13 = arith.constant 0 : index
      %16 = vector.load %arg3[%c0_12, %c0_13] : memref<8x1xf32, #tpu.memory_space<vmem>>, vector<8x1xf32>
      tpu.vector_store %arg3[%c0_12, %c0_13], %15 {strides = array<i32>} : memref<8x1xf32, #tpu.memory_space<vmem>>, vector<8x1xf32>,
      %cst_14 = arith.constant 0.000000e+00 : f32
      %17 = vector.broadcast %cst_14 : f32 to vector<8x1xf32>
      %c0_15 = arith.constant 0 : index
      %c0_16 = arith.constant 0 : index
      %18 = vector.load %arg4[%c0_15, %c0_16] : memref<8x1xf32, #tpu.memory_space<vmem>>, vector<8x1xf32>
      tpu.vector_store %arg4[%c0_15, %c0_16], %17 {strides = array<i32>} : memref<8x1xf32, #tpu.memory_space<vmem>>, vector<8x1xf32>,
    } else {
    }
    %c0 = arith.constant 0 : index
    %c0_1 = arith.constant 0 : index
    %3 = vector.load %arg2[%c0, %c0_1] : memref<8x256xf32, #tpu.memory_space<vmem>>, vector<8x256xf32>
    %c0_2 = arith.constant 0 : index
    %c0_3 = arith.constant 0 : index
    %4 = vector.load %arg3[%c0_2, %c0_3] : memref<8x1xf32, #tpu.memory_space<vmem>>, vector<8x1xf32>
    %cst = arith.constant dense<0.000000e+00> : vector<8xf32>
    %5 = vector.multi_reduction <add>, %3, %cst [1] : vector<8x256xf32> to vector<8xf32>
    %6 = vector.shape_cast %5 : vector<8xf32> to vector<8x1xf32>
    %7 = arith.addf %4, %6 : vector<8x1xf32>
    %c0_4 = arith.constant 0 : index
    %c0_5 = arith.constant 0 : index
    %8 = vector.load %arg3[%c0_4, %c0_5] : memref<8x1xf32, #tpu.memory_space<vmem>>, vector<8x1xf32>
    tpu.vector_store %arg3[%c0_4, %c0_5], %7 {strides = array<i32>} : memref<8x1xf32, #tpu.memory_space<vmem>>, vector<8x1xf32>,
    %c0_6 = arith.constant 0 : index
    %c0_7 = arith.constant 0 : index
    %9 = vector.load %arg4[%c0_6, %c0_7] : memref<8x1xf32, #tpu.memory_space<vmem>>, vector<8x1xf32>
    %10 = arith.mulf %3, %3 : vector<8x256xf32>
    %cst_8 = arith.constant dense<0.000000e+00> : vector<8xf32>
    %11 = vector.multi_reduction <add>, %10, %cst_8 [1] : vector<8x256xf32> to vector<8xf32>
    %12 = vector.shape_cast %11 : vector<8xf32> to vector<8x1xf32>
    %13 = arith.addf %9, %12 : vector<8x1xf32>
    %c0_9 = arith.constant 0 : index
    %c0_10 = arith.constant 0 : index
    %14 = vector.load %arg4[%c0_9, %c0_10] : memref<8x1xf32, #tpu.memory_space<vmem>>, vector<8x1xf32>
    tpu.vector_store %arg4[%c0_9, %c0_10], %13 {strides = array<i32>} : memref<8x1xf32, #tpu.memory_space<vmem>>, vector<8x1xf32>,
    return
  }
  func.func @transform_0(%arg0: i32, %arg1: i32) -> (i32, i32) {
    %c0_i32 = arith.constant 0 : i32
    return %arg0, %arg1 : i32, i32
  }
  func.func @transform_1(%arg0: i32, %arg1: i32) -> (i32, i32) {
    %c0_i32 = arith.constant 0 : i32
    %c0_i32_0 = arith.constant 0 : i32
    return %arg0, %c0_i32 : i32, i32
  }
  func.func @transform_2(%arg0: i32, %arg1: i32) -> (i32, i32) {
    %c0_i32 = arith.constant 0 : i32
    %c0_i32_0 = arith.constant 0 : i32
    return %arg0, %c0_i32 : i32, i32
  }
}

</mosaic_0001>

<llo_original>
// kernel: tpu_custom_call.1
$region0: #{tpu_custom_call.1}
  #allocation0 [shape = 'u32[]', space=smem, size = 0x4, offset = 0x4, fixed_abs, tag = 'smem constant byte address 0x4 - core index']
  #allocation1 [shape = 'u32[72,128]{1,0:T(1,128)}', space=vmem, size = 0x9000, scoped, tag = 'internal scratch']
  %s0 = inlined_call_operand.hbm [shape: f32[8,256], index: 0, kind: input, shape index: {}]
  %s1 = inlined_call_operand.vmem [shape: f32[8,1], index: 1, kind: output, shape index: {0}]
  %s2 = inlined_call_operand.vmem [shape: f32[8,1], index: 2, kind: output, shape index: {1}]
  %3 = xla_tuple %s1, %s2
  %s4 = sld [smem:[#allocation0]]
  $region30: #{tpu_custom_call.1} parent=0
    _
  %s6 = ssub.s32 1, %s4
  %s7 = scalar_select 0, %s6, %s4
  $region1: #{tpu_custom_call.1} parent=0
    #allocation2 [shape = 'u8[8192]{0}', space=vmem, size = 0x2000, scoped, tag = 'input window, operand 0, single buffered']
    #allocation3 [shape = 's32[1]{0}', space=sflag, size = 0x4, scoped, tag = 'scoped memory for tpu_custom_call.1']
    %8 = vsyncpa [#allocation3], 0
    // Predicated region
    $region2: #{tpu_custom_call.1} parent=1 // pred_check
      _
    $region3: #{tpu_custom_call.1} parent=1 // pred_check_branch
      %10 = sbr.rel (0) target = $region5
    $region4: #{tpu_custom_call.1} parent=1 // pred_region
      %12 = vsyncadd [#allocation3], 0
      %s14 = sshll.u32 %s0, 4
      %s15 = int_to_ptr.hbm [resolvable:$true] %s14
      %s16 = sshll.u32 [#allocation2], 4
      %s17 = int_to_ptr.vmem [resolvable:$true] %s16
      %19 = dma.hbm_to_vmem [thread:$0]  %s15, 256, %s17, [#allocation3]
    $region5: #{tpu_custom_call.1} parent=1 // pred_fallthru
      _
    // Predicated region
    $region6: #{tpu_custom_call.1} parent=1 // pred_check
      _
    $region7: #{tpu_custom_call.1} parent=1 // pred_check_branch
      %21 = sbr.rel (0) target = $region9
    $region8: #{tpu_custom_call.1} parent=1 // pred_region
      %23 = dma.done [#allocation3], 256
    $region9: #{tpu_custom_call.1} parent=1 // pred_fallthru
      _
    %p24 = scmp.eq.s32.totalorder 0, 0
    // Predicated region
    $region10: #{tpu_custom_call.1} parent=1 // pred_check
      %p25 = pneg %p24
    $region11: #{tpu_custom_call.1} parent=1 // pred_check_branch
      %27 = sbr.rel (%p25) target = $region13
    $region12: #{tpu_custom_call.1} parent=1 // pred_region
      %vm28 = vcmask 7168
      %29 = vst.msk [vmem:[%s1] sm:$0xff] %vm28, 0.0
      %30 = vst.msk [vmem:[%s2] sm:$0xff] %vm28, 0.0
    $region13: #{tpu_custom_call.1} parent=1 // pred_fallthru
      _
    %v31 = vld [vmem:[#allocation2] sm:$0xff]
    %v32 = vld [vmem:[#allocation2 + $0x8] sm:$0xff]
    %v33 = vld [vmem:[%s1] sm:$0xff]
    %v34 = vadd.f32 %v31, %v32
    %35 = vadd.xlane.f32.xlu0 %v34
    %v36 = vpop.xlane.xlu0 %35
    %v37 = vadd.f32 %v33, %v36
    %vm38 = vcmask 7168
    %39 = vst.msk [vmem:[%s1] sm:$0xff] %vm38, %v37
    %v40 = vld [vmem:[%s2] sm:$0xff]
    %v41 = vmul.f32 %v31, %v31
    %v42 = vmul.f32 %v32, %v32
    %v43 = vadd.f32 %v41, %v42
    %44 = vadd.xlane.f32.xlu0 %v43
    %v45 = vpop.xlane.xlu0 %44
    %v46 = vadd.f32 %v40, %v45
    %47 = vst.msk [vmem:[%s2] sm:$0xff] %vm38, %v46
    // Predicated region
    $region14: #{tpu_custom_call.1} parent=1 // pred_check
      _
    $region15: #{tpu_custom_call.1} parent=1 // pred_check_branch
      %49 = sbr.rel (0) target = $region17
    $region16: #{tpu_custom_call.1} parent=1 // pred_region
      _
    $region17: #{tpu_custom_call.1} parent=1 // pred_fallthru
      _
    // Predicated region
    $region18: #{tpu_custom_call.1} parent=1 // pred_check
      _
    $region19: #{tpu_custom_call.1} parent=1 // pred_check_branch
      %51 = sbr.rel (0) target = $region21
    $region20: #{tpu_custom_call.1} parent=1 // pred_region
      _
    $region21: #{tpu_custom_call.1} parent=1 // pred_fallthru
      _
    // Predicated region
    $region22: #{tpu_custom_call.1} parent=1 // pred_check
      _
    $region23: #{tpu_custom_call.1} parent=1 // pred_check_branch
      %53 = sbr.rel (0) target = $region25
    $region24: #{tpu_custom_call.1} parent=1 // pred_region
      _
    $region25: #{tpu_custom_call.1} parent=1 // pred_fallthru
      _
    // Predicated region
    $region26: #{tpu_custom_call.1} parent=1 // pred_check
      _
    $region27: #{tpu_custom_call.1} parent=1 // pred_check_branch
      %55 = sbr.rel (0) target = $region29
    $region28: #{tpu_custom_call.1} parent=1 // pred_region
      _
    $region29: #{tpu_custom_call.1} parent=1 // pred_fallthru
      _
    %56 = vsyncpa [#allocation3], 1

</llo_original>
